<compile_context>
chip_gen: v5e
topology: v5e:2x2
jax: 0.10.0
libtpu: 0.0.40
codegen_flags: <defaults>
</compile_context>

<pallas_src>
import jax
import jax.numpy as jnp
from jax import lax
from jax.experimental import pallas as pl
from jax.experimental.pallas import tpu as pltpu


# ---------------------------------------------------------------------------
# Stage 1: y = SiLU(c) @ W.T + b, computed once (contraction-tiled over D).
# ---------------------------------------------------------------------------
def _scale_vector_kernel(c_ref, w_ref, b_ref, y_ref, acc_ref):
    k = pl.program_id(0)

    @pl.when(k == 0)
    def _():
        acc_ref[...] = jnp.zeros_like(acc_ref)

    # SiLU in f32 for accuracy, then back to the weight's dtype so the MXU can
    # run its fast (e.g. bf16 x bf16 -> f32) path instead of the slow f32 path.
    c = c_ref[...].astype(jnp.float32)
    c = c * jax.nn.sigmoid(c)
    c = c.astype(w_ref.dtype)

    # y += c_silu @ W.T  -- contract over the weight's input-feature dim in its
    # native (out, in) layout; no transpose anywhere.
    acc_ref[...] += lax.dot_general(
        c, w_ref[...],
        dimension_numbers=(((1,), (1,)), ((), ())),
        preferred_element_type=jnp.float32,
    )

    @pl.when(k == pl.num_programs(0) - 1)
    def _():
        y_ref[...] = (acc_ref[...] + b_ref[...].astype(jnp.float32)).astype(y_ref.dtype)


# ---------------------------------------------------------------------------
# Stage 2: pure HBM-streaming broadcast multiply on a lane-dense (S, B*D) view.
# ---------------------------------------------------------------------------
def _broadcast_mul_kernel(x_ref, y_ref, o_ref):
    o_ref[...] = x_ref[...] * y_ref[...]


# ---------------------------------------------------------------------------
# Tiling heuristics.
# ---------------------------------------------------------------------------
def _default_block_bytes():
    """Per-generation stage-2 block budget.

    v7x: ~3.2 TB/s HBM but only 64 MiB VMEM -> bigger (6 MiB) blocks keep the 0.35 us
    per-step overhead negligible.  v5e/v6e (128 MiB VMEM): 4 MiB is the sweet spot.
    """
    try:
        info = pltpu.get_tpu_info()
        vmem = getattr(info, "vmem_capacity_bytes", None)
        if vmem is not None and vmem <= (64 << 20):
            return 6 << 20
    except Exception:
        pass
    return 4 << 20


def _pick_tiles(S, N, itemsize, target_block_bytes):
    """(seq_tile, n_tile) for the (S, N) streaming multiply."""
    # Sublane multiple by dtype packing: 8 (f32), 16 (bf16/f16), 32 (int8/fp8).
    sub = max(8, 32 // max(itemsize, 1))

    # N (lane) tiling only when even `sub` rows of the full row overflow the budget.
    if sub * N * itemsize > target_block_bytes and N > 128:
        n_tile = (target_block_bytes // (sub * itemsize)) // 128 * 128
        n_tile = max(128, min(n_tile, N))
        if n_tile >= N:
            n_tile = N
    else:
        n_tile = N

    row_bytes = n_tile * itemsize
    seq_tile = max(sub, (target_block_bytes // max(row_bytes, 1)) // sub * sub)

    # Guarantee >= 2 seq steps when the shape allows, so v7x's second TensorCore
    # always has a disjoint half of x to stream (no effect on single-TC v5e/v6e).
    if S >= 2 * sub:
        half = (S + 1) // 2
        half = ((half + sub - 1) // sub) * sub
        seq_tile = min(seq_tile, half)

    seq_tile = min(seq_tile, S)  # == S (full extent) is always layout-legal
    return seq_tile, n_tile


def _pick_k_tile(D, w_itemsize, target_bytes=4 << 20):
    """Contraction tile for the (D, D) weight in stage 1."""
    if D * D * w_itemsize <= target_bytes:
        return D
    tk = (target_bytes // (D * w_itemsize)) // 128 * 128
    tk = max(128, min(tk, D))
    while tk > 128 and D % tk != 0:
        tk -= 128
    if D % tk != 0:
        # TODO(synk): very large D that is not a multiple of 128 falls back to a
        # single full-weight block (would need in-kernel masking of the padded
        # contraction chunk to tile safely).
        return D
    return tk


# ---------------------------------------------------------------------------
# Public wrapper.
# ---------------------------------------------------------------------------
def zero_scale_mod(x, c, weight, bias, *, target_block_bytes=None):
    """x: (S, B, D), c: (B, D), weight: (D, D), bias: (D,) -> (S, B, D)."""
    S, B, D = x.shape
    N = B * D
    itemsize = jnp.dtype(x.dtype).itemsize
    if target_block_bytes is None:
        target_block_bytes = _default_block_bytes()

    # ---- Stage 1: scale vector, computed once (SiLU + Linear). ----
    tk = _pick_k_tile(D, jnp.dtype(weight.dtype).itemsize)
    k_steps = pl.cdiv(D, tk)
    y = pl.pallas_call(
        _scale_vector_kernel,
        out_shape=jax.ShapeDtypeStruct((B, D), x.dtype),
        grid_spec=pltpu.PrefetchScalarGridSpec(
            num_scalar_prefetch=0,
            grid=(k_steps,),
            in_specs=[
                pl.BlockSpec((B, tk), lambda k: (0, k)),   # c chunk
                pl.BlockSpec((D, tk), lambda k: (0, k)),   # weight chunk (native layout)
                pl.BlockSpec((1, D), lambda k: (0, 0)),    # bias (resident)
            ],
            out_specs=pl.BlockSpec((B, D), lambda k: (0, 0)),
            scratch_shapes=[pltpu.VMEM((B, D), jnp.float32)],
        ),
        compiler_params=pltpu.CompilerParams(
            dimension_semantics=("arbitrary",),            # contraction axis
        ),
    )(c, weight, bias.reshape(1, D))

    # ---- Stage 2: lane-dense streaming broadcast multiply over (S, B*D). ----
    x2 = x.reshape(S, N)
    y2 = y.reshape(1, N)
    seq_tile, n_tile = _pick_tiles(S, N, itemsize, target_block_bytes)
    grid = (pl.cdiv(S, seq_tile), pl.cdiv(N, n_tile))

    # 2 double-buffered copies each of the x and out blocks (+ tiny y) must fit the
    # scoped-VMEM limit; set it explicitly so bigger blocks are safe on v5e's 16 MiB
    # default while staying far under v7x's 64 MiB physical VMEM.
    block_bytes = seq_tile * n_tile * itemsize
    vmem_limit = int(min(56 << 20, max(32 << 20, 5 * block_bytes + (2 << 20))))

    out2 = pl.pallas_call(
        _broadcast_mul_kernel,
        out_shape=jax.ShapeDtypeStruct((S, N), x.dtype),
        grid_spec=pltpu.PrefetchScalarGridSpec(
            num_scalar_prefetch=0,
            grid=grid,
            in_specs=[
                pl.BlockSpec((seq_tile, n_tile), lambda s, n: (s, n)),  # x tile
                pl.BlockSpec((1, n_tile), lambda s, n: (0, n)),         # y (invariant)
            ],
            out_specs=pl.BlockSpec((seq_tile, n_tile), lambda s, n: (s, n)),
        ),
        compiler_params=pltpu.CompilerParams(
            dimension_semantics=("parallel", "parallel"),  # seq + lane shards on v7x
            vmem_limit_bytes=vmem_limit,
        ),
    )(x2, y2)

    return out2.reshape(S, B, D)


def zero_scale_mod_ref(x, c, weight, bias):
    """Pure-JAX reference matching the PyTorch forward exactly."""
    c = c * jax.nn.sigmoid(c)
    y = c @ weight.T + bias
    return x * y[None]


if __name__ == "__main__":
    key = jax.random.PRNGKey(0)
    k_x, k_c, k_w, k_b = jax.random.split(key, 4)

    S, B, D = 8, 2, 32  # small shapes consistent with the module (dim = D)

    x = jax.random.normal(k_x, (S, B, D), dtype=jnp.float32)
    c = jax.random.normal(k_c, (B, D), dtype=jnp.float32)
    # Deterministic, non-trivial parameter init (the module's reset_parameters
    # would zero these out, which makes the output trivially zero).
    weight = jax.random.normal(k_w, (D, D), dtype=jnp.float32) * 0.02
    bias = jax.random.normal(k_b, (D,), dtype=jnp.float32) * 0.02

    out = zero_scale_mod(x, c, weight, bias)
    out = jax.block_until_ready(out)

    ref = zero_scale_mod_ref(x, c, weight, bias)
    assert out.shape == (S, B, D)
    assert jnp.allclose(out, ref, atol=1e-5, rtol=1e-5), "mismatch vs reference"

    print("KERNEL_OK")
</pallas_src>

<mosaic_0001>
module attributes {stable_mosaic.version = 11 : i64} {
  func.func @_scale_vector_kernel(%arg0: i32, %arg1: memref<2x32xf32, #tpu.memory_space<vmem>>, %arg2: memref<32x32xf32, #tpu.memory_space<vmem>>, %arg3: memref<1x32xf32, #tpu.memory_space<vmem>>, %arg4: memref<2x32xf32, #tpu.memory_space<vmem>>, %arg5: memref<2x32xf32, #tpu.memory_space<vmem>>) attributes {dimension_semantics = [#tpu.dimension_semantics<arbitrary>], iteration_bounds = array<i64: 1>, scalar_prefetch = 0 : i64, scratch_operands = 1 : i64, tpu.core_type = #tpu.core_type<tc>, window_params = [{transform_indices = @transform_0, window_bounds = array<i64: 2, 32>}, {transform_indices = @transform_1, window_bounds = array<i64: 32, 32>}, {pipeline_mode = #tpu.pipeline_mode<synchronous>, transform_indices = @transform_2, window_bounds = array<i64: 1, 32>}, {pipeline_mode = #tpu.pipeline_mode<synchronous>, transform_indices = @transform_3, window_bounds = array<i64: 2, 32>}]} {
    %c0_i32 = arith.constant 0 : i32
    %0 = arith.cmpi eq, %arg0, %c0_i32 : i32
    %1 = arith.extui %0 : i1 to i32
    %c0_i32_0 = arith.constant 0 : i32
    %2 = arith.cmpi ne, %1, %c0_i32_0 : i32
    scf.if %2 {
      %cst_11 = arith.constant 0.000000e+00 : f32
      %18 = vector.broadcast %cst_11 : f32 to vector<2x32xf32>
      %c0_12 = arith.constant 0 : index
      %c0_13 = arith.constant 0 : index
      %19 = vector.load %arg5[%c0_12, %c0_13] : memref<2x32xf32, #tpu.memory_space<vmem>>, vector<2x32xf32>
      tpu.vector_store %arg5[%c0_12, %c0_13], %18 {strides = array<i32>} : memref<2x32xf32, #tpu.memory_space<vmem>>, vector<2x32xf32>,
    } else {
    }
    %c0 = arith.constant 0 : index
    %c0_1 = arith.constant 0 : index
    %3 = vector.load %arg1[%c0, %c0_1] : memref<2x32xf32, #tpu.memory_space<vmem>>, vector<2x32xf32>
    %4 = arith.negf %3 : vector<2x32xf32>
    %5 = math.exp %4 : vector<2x32xf32>
    %cst = arith.constant 1.000000e+00 : f32
    %6 = vector.broadcast %cst : f32 to vector<2x32xf32>
    %7 = arith.addf %6, %5 : vector<2x32xf32>
    %8 = arith.divf %6, %7 : vector<2x32xf32>
    %9 = arith.mulf %3, %8 : vector<2x32xf32>
    %c0_2 = arith.constant 0 : index
    %c0_3 = arith.constant 0 : index
    %10 = vector.load %arg5[%c0_2, %c0_3] : memref<2x32xf32, #tpu.memory_space<vmem>>, vector<2x32xf32>
    %c0_4 = arith.constant 0 : index
    %c0_5 = arith.constant 0 : index
    %11 = vector.load %arg2[%c0_4, %c0_5] : memref<32x32xf32, #tpu.memory_space<vmem>>, vector<32x32xf32>
    %cst_6 = arith.constant dense<0.000000e+00> : vector<2x32xf32>
    %12 = tpu.matmul %9, %11, %cst_6 {dimension_numbers = #tpu.dot_dimension_numbers<[1], [1], [0], [0], [0, 0, 1, 0], [], []>} : vector<2x32xf32>, vector<32x32xf32>, vector<2x32xf32> -> vector<2x32xf32>
    %13 = arith.addf %10, %12 : vector<2x32xf32>
    %c0_7 = arith.constant 0 : index
    %c0_8 = arith.constant 0 : index
    %14 = vector.load %arg5[%c0_7, %c0_8] : memref<2x32xf32, #tpu.memory_space<vmem>>, vector<2x32xf32>
    tpu.vector_store %arg5[%c0_7, %c0_8], %13 {strides = array<i32>} : memref<2x32xf32, #tpu.memory_space<vmem>>, vector<2x32xf32>,
    %c0_i32_9 = arith.constant 0 : i32
    %15 = arith.cmpi eq, %arg0, %c0_i32_9 : i32
    %16 = arith.extui %15 : i1 to i32
    %c0_i32_10 = arith.constant 0 : i32
    %17 = arith.cmpi ne, %16, %c0_i32_10 : i32
    scf.if %17 {
      %c0_11 = arith.constant 0 : index
      %c0_12 = arith.constant 0 : index
      %18 = vector.load %arg5[%c0_11, %c0_12] : memref<2x32xf32, #tpu.memory_space<vmem>>, vector<2x32xf32>
      %c0_13 = arith.constant 0 : index
      %c0_14 = arith.constant 0 : index
      %19 = vector.load %arg3[%c0_13, %c0_14] : memref<1x32xf32, #tpu.memory_space<vmem>>, vector<1x32xf32>
      %20 = vector.broadcast %19 : vector<1x32xf32> to vector<2x32xf32>
      %21 = arith.addf %18, %20 : vector<2x32xf32>
      %c0_15 = arith.constant 0 : index
      %c0_16 = arith.constant 0 : index
      %22 = vector.load %arg4[%c0_15, %c0_16] : memref<2x32xf32, #tpu.memory_space<vmem>>, vector<2x32xf32>
      tpu.vector_store %arg4[%c0_15, %c0_16], %21 {strides = array<i32>} : memref<2x32xf32, #tpu.memory_space<vmem>>, vector<2x32xf32>,
    } else {
    }
    return
  }
  func.func @transform_0(%arg0: i32) -> (i32, i32) {
    %c0_i32 = arith.constant 0 : i32
    %c0_i32_0 = arith.constant 0 : i32
    return %c0_i32, %arg0 : i32, i32
  }
  func.func @transform_1(%arg0: i32) -> (i32, i32) {
    %c0_i32 = arith.constant 0 : i32
    %c0_i32_0 = arith.constant 0 : i32
    return %c0_i32, %arg0 : i32, i32
  }
  func.func @transform_2(%arg0: i32) -> (i32, i32) {
    %c0_i32 = arith.constant 0 : i32
    %c0_i32_0 = arith.constant 0 : i32
    %c0_i32_1 = arith.constant 0 : i32
    return %c0_i32, %c0_i32_0 : i32, i32
  }
  func.func @transform_3(%arg0: i32) -> (i32, i32) {
    %c0_i32 = arith.constant 0 : i32
    %c0_i32_0 = arith.constant 0 : i32
    %c0_i32_1 = arith.constant 0 : i32
    return %c0_i32, %c0_i32_0 : i32, i32
  }
}

</mosaic_0001>

<llo_original>
// kernel: tpu_custom_call.1
$region0: #{tpu_custom_call.1}
  #allocation0 [shape = 'u32[]', space=smem, size = 0x4, offset = 0x4, fixed_abs, tag = 'smem constant byte address 0x4 - core index']
  #allocation1 [shape = 'u32[72,128]{1,0:T(1,128)}', space=vmem, size = 0x9000, scoped, tag = 'internal scratch']
  #allocation2 [shape = 'f32[2,32]{1,0:T(2,128)}', space=vmem, size = 0x400, scoped, tag = 'scratch operand']
  %s0 = inlined_call_operand.hbm [shape: f32[2,32], index: 0, kind: input, shape index: {}]
  %s1 = inlined_call_operand.hbm [shape: f32[32,32], index: 1, kind: input, shape index: {}]
  %s2 = inlined_call_operand.vmem [shape: f32[1,32], index: 2, kind: input, shape index: {}]
  %s3 = inlined_call_operand.hbm [shape: f32[2,32], index: 3, kind: output, shape index: {}]
  %s4 = sld [smem:[#allocation0]]
  $region38: #{tpu_custom_call.1} parent=0
    _
  %s6 = ssub.s32 1, %s4
  %s7 = scalar_select 0, %s6, %s4
  $region1: #{tpu_custom_call.1} parent=0
    #allocation3 [shape = 'u8[1024]{0}', space=vmem, size = 0x400, scoped, tag = 'input window, operand 0, single buffered']
    #allocation4 [shape = 's32[1]{0}', space=sflag, size = 0x4, scoped, tag = 'scoped memory for tpu_custom_call.1']
    #allocation5 [shape = 's32[1]{0}', space=sflag, size = 0x4, scoped, tag = 'scoped memory for tpu_custom_call.1']
    #allocation6 [shape = 'u8[16384]{0}', space=vmem, size = 0x4000, scoped, tag = 'input window, operand 1, single buffered']
    #allocation7 [shape = 's32[1]{0}', space=sflag, size = 0x4, scoped, tag = 'scoped memory for tpu_custom_call.1']
    #allocation8 [shape = 'u8[1024]{0}', space=vmem, size = 0x400, scoped, tag = 'output window, operand 0, single buffered']
    %8 = vsyncpa [#allocation4], 0
    %9 = vsyncpa [#allocation7], 0
    %10 = vsyncpa [#allocation5], 0
    // Predicated region
    $region2: #{tpu_custom_call.1} parent=1 // pred_check
      _
    $region3: #{tpu_custom_call.1} parent=1 // pred_check_branch
      %12 = sbr.rel (0) target = $region5
    $region4: #{tpu_custom_call.1} parent=1 // pred_region
      %14 = vsyncadd [#allocation4], 0
      %s16 = sshll.u32 %s0, 4
      %s17 = int_to_ptr.hbm [resolvable:$true] %s16
      %s18 = sshll.u32 [#allocation3], 4
      %s19 = int_to_ptr.vmem [resolvable:$true] %s18
      %21 = dma.hbm_to_vmem [thread:$0]  %s17, 32, %s19, [#allocation4]
    $region5: #{tpu_custom_call.1} parent=1 // pred_fallthru
      _
    // Predicated region
    $region6: #{tpu_custom_call.1} parent=1 // pred_check
      _
    $region7: #{tpu_custom_call.1} parent=1 // pred_check_branch
      %23 = sbr.rel (0) target = $region9
    $region8: #{tpu_custom_call.1} parent=1 // pred_region
      %25 = vsyncadd [#allocation7], 0
      %s26 = sshll.u32 %s1, 4
      %s27 = int_to_ptr.hbm [resolvable:$true] %s26
      %s28 = sshll.u32 [#allocation6], 4
      %s29 = int_to_ptr.vmem [resolvable:$true] %s28
      %34 = dma.hbm_to_vmem [thread:$0]  %s27, 512, %s29, [#allocation7], 128, 128, 8
    $region9: #{tpu_custom_call.1} parent=1 // pred_fallthru
      _
    // Predicated region
    $region10: #{tpu_custom_call.1} parent=1 // pred_check
      _
    $region11: #{tpu_custom_call.1} parent=1 // pred_check_branch
      %36 = sbr.rel (0) target = $region13
    $region12: #{tpu_custom_call.1} parent=1 // pred_region
      _
    $region13: #{tpu_custom_call.1} parent=1 // pred_fallthru
      _
    // Predicated region
    $region14: #{tpu_custom_call.1} parent=1 // pred_check
      _
    $region15: #{tpu_custom_call.1} parent=1 // pred_check_branch
      %38 = sbr.rel (0) target = $region17
    $region16: #{tpu_custom_call.1} parent=1 // pred_region
      %40 = dma.done [#allocation4], 32
    $region17: #{tpu_custom_call.1} parent=1 // pred_fallthru
      _
    // Predicated region
    $region18: #{tpu_custom_call.1} parent=1 // pred_check
      _
    $region19: #{tpu_custom_call.1} parent=1 // pred_check_branch
      %42 = sbr.rel (0) target = $region21
    $region20: #{tpu_custom_call.1} parent=1 // pred_region
      %44 = dma.done [#allocation7], 512
    $region21: #{tpu_custom_call.1} parent=1 // pred_fallthru
      _
    %p45 = scmp.eq.s32.totalorder 0, 0
    // Predicated region
    $region22: #{tpu_custom_call.1} parent=1 // pred_check
      %p46 = pneg %p45
    $region23: #{tpu_custom_call.1} parent=1 // pred_check_branch
      %48 = sbr.rel (%p46) target = $region25
    $region24: #{tpu_custom_call.1} parent=1 // pred_region
      %vm49 = vcmask 254976
      %50 = vst.msk [vmem:[#allocation2] sm:$0x3] %vm49, 0.0
    $region25: #{tpu_custom_call.1} parent=1 // pred_fallthru
      _
    %v51 = vld [vmem:[#allocation3] sm:$0x3]
    %v52 = vxor.u32 %v51, 2147483648
    %v53 = vmul.f32 %v52, 1.442695
    %v54 = vpow.pop %v53
    %v55 = vadd.f32 %v54, 1.0
    %v56 = vrcp.pop %v55
    %v57 = vmul.f32 %v55, %v56
    %v58 = vsub.f32 1.0, %v57
    %v59 = vmul.f32 %v56, %v58
    %v60 = vadd.f32 %v56, %v59
    %vm61 = vweird.f32 %v55
    %vm62 = vweird.f32 %v56
    %vm63 = vmor %vm61, %vm62
    %v64 = vsel %vm63, %v56, %v60
    %v65 = vand.u32 2147483647, %v55
    %vm66 = vcmp.eq.f32.partialorder %v65, 8.507059e+37
    %v67 = vand.u32 %v55, 2147483648
    %v68 = vor.u32 1.1754944e-38, %v67
    %v69 = vsel %vm66, %v68, %v64
    %v70 = vmul.f32 1.0, %v69
    %v71 = vmul.f32 %v51, %v70
    %v72 = vld [vmem:[#allocation2] sm:$0x3]
    %v73 = vld [vmem:[#allocation6] sm:$0xff]
    %v74 = vld [vmem:[#allocation6 + $0x8] sm:$0xff]
    %v75 = vld [vmem:[#allocation6 + $0x10] sm:$0xff]
    %v76 = vld [vmem:[#allocation6 + $0x18] sm:$0xff]
    %vm77 = vcmask 261120
    %v79 = vsel %vm77, %v71, 0
    %v82 = vsel %vm77, %v73, 0
    %v85 = vsel %vm77, %v74, 0
    %v88 = vsel %vm77, %v75, 0
    %v91 = vsel %vm77, %v76, 0
    %93 = vmatpush.xpose.msra.mxu0 0.0
    %94 = vmatpush.xpose.msra.mxu0 0.0
    %95 = vmatpush.xpose.msra.mxu0 0.0
    %96 = vmatpush.xpose.msra.mxu0 0.0
    %97 = vmatpush.xpose.msra.mxu0 0.0
    %98 = vmatpush.xpose.msra.mxu0 0.0
    %99 = vmatpush.xpose.msra.mxu0 0.0
    %100 = vmatpush.xpose.msra.mxu0 0.0
    %101 = vmatpush.xpose.msra.mxu0 0.0
    %102 = vmatpush.xpose.msra.mxu0 0.0
    %103 = vmatpush.xpose.msra.mxu0 0.0
    %104 = vmatpush.xpose.msra.mxu0 0.0
    %105 = vmatpush.xpose.msra.mxu0 %v91
    %106 = vmatpush.xpose.msra.mxu0 %v88
    %107 = vmatpush.xpose.msra.mxu0 %v85
    %108 = vmatpush.xpose.msra.mxu0 %v82
    %109 = vmatmul.f32.gmra.mxu0 %v79
    %v110 = vpop.f32.mrf.mxu0
    %v111 = vadd.f32 0.0, %v110
    %112 = vdwg.mxu0
    %v113 = vadd.f32 %v72, %v111
    %vm114 = vcmask 254976
    %115 = vst.msk [vmem:[#allocation2] sm:$0x3] %vm114, %v113
    // Predicated region
    $region26: #{tpu_custom_call.1} parent=1 // pred_check
      %p116 = pneg %p45
    $region27: #{tpu_custom_call.1} parent=1 // pred_check_branch
      %118 = sbr.rel (%p116) target = $region29
    $region28: #{tpu_custom_call.1} parent=1 // pred_region
      %v119 = vld [vmem:[#allocation2] sm:$0x3]
      %v120 = vld [vmem:[%s2] sm:$0x1]
      %v122 = vperm.slane %v120, 0
      %v124 = vadd.f32 %v119, %v122
      %125 = vst.msk [vmem:[#allocation8] sm:$0x3] %vm114, %v124
    $region29: #{tpu_custom_call.1} parent=1 // pred_fallthru
      _
    // Predicated region
    $region30: #{tpu_custom_call.1} parent=1 // pred_check
      _
    $region31: #{tpu_custom_call.1} parent=1 // pred_check_branch
      %127 = sbr.rel (0) target = $region33
    $region32: #{tpu_custom_call.1} parent=1 // pred_region
      %129 = vsyncadd [#allocation5], 0
      %s131 = sshll.u32 [#allocation8], 4
      %s132 = int_to_ptr.vmem [resolvable:$true] %s131
      %s133 = sshll.u32 %s3, 4
      %s134 = int_to_ptr.hbm [resolvable:$true] %s133
      %136 = dma.vmem_to_hbm [thread:$0]  %s132, 32, %s134, [#allocation5]
    $region33: #{tpu_custom_call.1} parent=1 // pred_fallthru
      _
    // Predicated region
    $region34: #{tpu_custom_call.1} parent=1 // pred_check
      _
    $region35: #{tpu_custom_call.1} parent=1 // pred_check_branch
      %138 = sbr.rel (0) target = $region37
    $region36: #{tpu_custom_call.1} parent=1 // pred_region
      %140 = dma.done [#allocation5], 32
    $region37: #{tpu_custom_call.1} parent=1 // pred_fallthru
      _
    %141 = vsyncpa [#allocation4], 1
    %142 = vsyncpa [#allocation7], 1
    %143 = vsyncpa [#allocation5], 1

</llo_original>
